<compile_context>
chip_gen: v7x
topology: tpu7x:2x2x1
jax: 0.10.0
libtpu: 0.0.40
codegen_flags: <defaults>
</compile_context>

<pallas_src>
import jax
import jax.numpy as jnp
from jax.experimental import pallas as pl
from jax.experimental.pallas import tpu as pltpu

NEG_SLOPE = 0.01
PADDING = 1
OUTPUT_PADDING = 4


def _ct_leaky_kernel(x_ref, w_ref, b_ref, o_ref):
    """x_ref: (N, Cin, P) f32 VMEM, already in flattened output coordinates
    (zero in the bias-only border); w_ref: (Cout, Cin) f32 VMEM;
    b_ref: (Cout, 1) f32 VMEM; o_ref: (N, Cout, P) f32 VMEM."""
    N = x_ref.shape[0]
    w = w_ref[...]          # (Cout, Cin) — loaded once, reused for all batches
    b = b_ref[...]          # (Cout, 1)   — lane-broadcasts against (Cout, P)
    for n in range(N):      # N is tiny & static: 1 MXU dot + 1 dense store each
        acc = jnp.dot(w, x_ref[n], preferred_element_type=jnp.float32) + b
        o_ref[n] = jnp.where(acc > 0.0, acc, acc * NEG_SLOPE).astype(o_ref.dtype)


def conv_transpose_leaky(x, w, b):
    """x: (N, Cin, H, W) f32; w: (Cin, Cout) f32 (the 1x1 kernel); b: (Cout,) f32."""
    N, Cin, H, W = x.shape
    Cout = w.shape[1]
    Hc, Wc = H - 2 * PADDING, W - 2 * PADDING
    Hout, Wout = Hc + OUTPUT_PADDING, Wc + OUTPUT_PADDING
    P = Hout * Wout

    # Layout plumbing (free-ish XLA slice + pad + reshape, ~8 KiB): present x in
    # flattened output coordinates so the kernel is one dense contraction with
    # one full store per batch — no masked loads/stores, no in-kernel crop.
    x_int = x[:, :, PADDING:H - PADDING, PADDING:W - PADDING]
    x_pad = jnp.pad(x_int, ((0, 0), (0, 0), (0, Hout - Hc), (0, Wout - Wc)))
    x_flat = x_pad.reshape(N, Cin, P)
    w_t = jnp.transpose(w)          # (Cout, Cin)
    b_col = b.reshape(Cout, 1)      # lane-broadcastable bias

    out_flat = pl.pallas_call(
        _ct_leaky_kernel,
        out_shape=jax.ShapeDtypeStruct((N, Cout, P), x.dtype),
        in_specs=[
            pl.BlockSpec(memory_space=pltpu.MemorySpace.VMEM),
            pl.BlockSpec(memory_space=pltpu.MemorySpace.VMEM),
            pl.BlockSpec(memory_space=pltpu.MemorySpace.VMEM),
        ],
        out_specs=pl.BlockSpec(memory_space=pltpu.MemorySpace.VMEM),
    )(x_flat, w_t, b_col)

    return out_flat.reshape(N, Cout, Hout, Wout)


if __name__ == "__main__":
    key = jax.random.PRNGKey(0)
    kx, kw, kb = jax.random.split(key, 3)

    # small shapes consistent with the module: N=2, Cin=3, H=W=16
    x = jax.random.normal(kx, (2, 3, 16, 16), dtype=jnp.float32)
    # ConvTranspose2d(3, 8, 1) weight: (in=3, out=8, 1, 1) -> (3, 8)
    w = jax.random.normal(kw, (3, 8), dtype=jnp.float32) * 0.1
    b = jax.random.normal(kb, (8,), dtype=jnp.float32) * 0.1

    out = jax.block_until_ready(conv_transpose_leaky(x, w, b))
    assert out.shape == (2, 8, 18, 18), out.shape

    # pure-JAX reference (same extended semantics)
    Hc, Wc = 16 - 2 * PADDING, 16 - 2 * PADDING
    xi = x[:, :, PADDING:-PADDING, PADDING:-PADDING]            # (N, Cin, Hc, Wc)
    y_int = jnp.einsum("nkhw,kc->nchw", xi, w) + b[None, :, None, None]
    y_int = jnp.where(y_int > 0, y_int, y_int * NEG_SLOPE)
    pad_v = jnp.where(b > 0, b, b * NEG_SLOPE)
    ref = jnp.broadcast_to(pad_v[None, :, None, None], out.shape)
    ref = ref.at[:, :, :Hc, :Wc].set(y_int)
    assert jnp.allclose(out, ref, rtol=1e-5, atol=1e-5), float(jnp.abs(out - ref).max())

    print("KERNEL_OK")
</pallas_src>

<mosaic_0001>
module attributes {stable_mosaic.version = 11 : i64} {
  func.func @_ct_leaky_kernel(%arg0: memref<2x3x324xf32, #tpu.memory_space<vmem>>, %arg1: memref<8x3xf32, #tpu.memory_space<vmem>>, %arg2: memref<8x1xf32, #tpu.memory_space<vmem>>, %arg3: memref<2x8x324xf32, #tpu.memory_space<vmem>>) attributes {dimension_semantics = [], scalar_prefetch = 0 : i64, scratch_operands = 0 : i64, tpu.core_type = #tpu.core_type<tc>} {
    %c0 = arith.constant 0 : index
    %c0_0 = arith.constant 0 : index
    %0 = vector.load %arg1[%c0, %c0_0] : memref<8x3xf32, #tpu.memory_space<vmem>>, vector<8x3xf32>
    %c0_1 = arith.constant 0 : index
    %c0_2 = arith.constant 0 : index
    %1 = vector.load %arg2[%c0_1, %c0_2] : memref<8x1xf32, #tpu.memory_space<vmem>>, vector<8x1xf32>
    %c0_3 = arith.constant 0 : index
    %c0_4 = arith.constant 0 : index
    %c0_5 = arith.constant 0 : index
    %2 = vector.load %arg0[%c0_3, %c0_4, %c0_5] : memref<2x3x324xf32, #tpu.memory_space<vmem>>, vector<1x3x324xf32>
    %3 = vector.shape_cast %2 : vector<1x3x324xf32> to vector<3x324xf32>
    %cst = arith.constant dense<0.000000e+00> : vector<8x324xf32>
    %4 = tpu.matmul %0, %3, %cst {dimension_numbers = #tpu.dot_dimension_numbers<[1], [0], [0], [1], [0, 0, 1, 1], [], []>} : vector<8x3xf32>, vector<3x324xf32>, vector<8x324xf32> -> vector<8x324xf32>
    %5 = vector.broadcast %1 : vector<8x1xf32> to vector<8x324xf32>
    %6 = arith.addf %4, %5 : vector<8x324xf32>
    %cst_6 = arith.constant 0.000000e+00 : f32
    %7 = vector.broadcast %cst_6 : f32 to vector<8x324xf32>
    %8 = arith.cmpf ogt, %6, %7 : vector<8x324xf32>
    %cst_7 = arith.constant 0.00999999977 : f32
    %9 = vector.broadcast %cst_7 : f32 to vector<8x324xf32>
    %10 = arith.mulf %6, %9 : vector<8x324xf32>
    %11 = arith.select %8, %6, %10 : vector<8x324xi1>, vector<8x324xf32>
    %c0_8 = arith.constant 0 : index
    %c0_9 = arith.constant 0 : index
    %c0_10 = arith.constant 0 : index
    %12 = vector.load %arg3[%c0_8, %c0_9, %c0_10] : memref<2x8x324xf32, #tpu.memory_space<vmem>>, vector<1x8x324xf32>
    %13 = vector.shape_cast %12 : vector<1x8x324xf32> to vector<8x324xf32>
    %14 = vector.shape_cast %11 : vector<8x324xf32> to vector<1x8x324xf32>
    tpu.vector_store %arg3[%c0_8, %c0_9, %c0_10], %14 {strides = array<i32>} : memref<2x8x324xf32, #tpu.memory_space<vmem>>, vector<1x8x324xf32>,
    %c1 = arith.constant 1 : index
    %c0_11 = arith.constant 0 : index
    %c0_12 = arith.constant 0 : index
    %15 = vector.load %arg0[%c1, %c0_11, %c0_12] : memref<2x3x324xf32, #tpu.memory_space<vmem>>, vector<1x3x324xf32>
    %16 = vector.shape_cast %15 : vector<1x3x324xf32> to vector<3x324xf32>
    %cst_13 = arith.constant dense<0.000000e+00> : vector<8x324xf32>
    %17 = tpu.matmul %0, %16, %cst_13 {dimension_numbers = #tpu.dot_dimension_numbers<[1], [0], [0], [1], [0, 0, 1, 1], [], []>} : vector<8x3xf32>, vector<3x324xf32>, vector<8x324xf32> -> vector<8x324xf32>
    %18 = vector.broadcast %1 : vector<8x1xf32> to vector<8x324xf32>
    %19 = arith.addf %17, %18 : vector<8x324xf32>
    %cst_14 = arith.constant 0.000000e+00 : f32
    %20 = vector.broadcast %cst_14 : f32 to vector<8x324xf32>
    %21 = arith.cmpf ogt, %19, %20 : vector<8x324xf32>
    %cst_15 = arith.constant 0.00999999977 : f32
    %22 = vector.broadcast %cst_15 : f32 to vector<8x324xf32>
    %23 = arith.mulf %19, %22 : vector<8x324xf32>
    %24 = arith.select %21, %19, %23 : vector<8x324xi1>, vector<8x324xf32>
    %c1_16 = arith.constant 1 : index
    %c0_17 = arith.constant 0 : index
    %c0_18 = arith.constant 0 : index
    %25 = vector.load %arg3[%c1_16, %c0_17, %c0_18] : memref<2x8x324xf32, #tpu.memory_space<vmem>>, vector<1x8x324xf32>
    %26 = vector.shape_cast %25 : vector<1x8x324xf32> to vector<8x324xf32>
    %27 = vector.shape_cast %24 : vector<8x324xf32> to vector<1x8x324xf32>
    tpu.vector_store %arg3[%c1_16, %c0_17, %c0_18], %27 {strides = array<i32>} : memref<2x8x324xf32, #tpu.memory_space<vmem>>, vector<1x8x324xf32>,
    return
  }
}

</mosaic_0001>

<llo_original>
// kernel: tpu_custom_call.1
$region0: #{tpu_custom_call.1}
  #allocation0 [shape = 'u32[]', space=smem, size = 0x4, offset = 0x4, fixed_abs, tag = 'smem constant byte address 0x4 - core index']
  #allocation1 [shape = 'u32[144,128]{1,0:T(1,128)}', space=vmem, size = 0x12000, scoped, tag = 'internal scratch']
  %s0 = inlined_call_operand.vmem [shape: f32[2,3,324], index: 0, kind: input, shape index: {}]
  %s1 = inlined_call_operand.vmem [shape: f32[8,3], index: 1, kind: input, shape index: {}]
  %s2 = inlined_call_operand.vmem [shape: f32[8,1], index: 2, kind: input, shape index: {}]
  %s3 = inlined_call_operand.hbm [shape: f32[2,8,324], index: 3, kind: output, shape index: {}]
  %s4 = sld [smem:[#allocation0]]
  $region22: #{tpu_custom_call.1} parent=0
    _
  %s6 = ssub.s32 1, %s4
  %s7 = scalar_select 0, %s6, %s4
  $region1: #{tpu_custom_call.1} parent=0
    #allocation2 [shape = 'u8[24576]{0}', space=vmem, size = 0x6000, scoped, tag = 'output window, operand 0, single buffered']
    #allocation3 [shape = 's32[1]{0}', space=sflag, size = 0x4, scoped, tag = 'scoped memory for tpu_custom_call.1']
    %8 = vsyncpa [#allocation3], 0
    // Predicated region
    $region2: #{tpu_custom_call.1} parent=1 // pred_check
      _
    $region3: #{tpu_custom_call.1} parent=1 // pred_check_branch
      %10 = sbr.rel (0) target = $region5
    $region4: #{tpu_custom_call.1} parent=1 // pred_region
      _
    $region5: #{tpu_custom_call.1} parent=1 // pred_fallthru
      _
    // Predicated region
    $region6: #{tpu_custom_call.1} parent=1 // pred_check
      _
    $region7: #{tpu_custom_call.1} parent=1 // pred_check_branch
      %12 = sbr.rel (0) target = $region9
    $region8: #{tpu_custom_call.1} parent=1 // pred_region
      _
    $region9: #{tpu_custom_call.1} parent=1 // pred_fallthru
      _
    // Predicated region
    $region10: #{tpu_custom_call.1} parent=1 // pred_check
      _
    $region11: #{tpu_custom_call.1} parent=1 // pred_check_branch
      %14 = sbr.rel (0) target = $region13
    $region12: #{tpu_custom_call.1} parent=1 // pred_region
      _
    $region13: #{tpu_custom_call.1} parent=1 // pred_fallthru
      _
    %v15 = vld [vmem:[%s1] sm:$0xff]
    %v16 = vld [vmem:[%s2] sm:$0xff]
    %v17 = vld [vmem:[%s0] sm:$0x77]
    %v18 = vld [vmem:[%s0 + $0x8] sm:$0x7]
    %20 = vset.pattern.permute.xlu0 0
    %21 = vperm.xlu0 %20, %v16
    %v22 = vpop.permute.xlu0 %21
    %v26 = vcombine.high %v17, %v17
    %vm27 = vcmask 23552
    %v29 = vsel %vm27, %v15, 0
    %vm31 = vcmask 1042432
    %v32 = vsel %vm31, %v17, 0
    %v34 = vsel %vm31, %v26, 0
    %v36 = vsel %vm31, %v18, 0
    %38 = vmatprep.subr.mxu0 %v34
    %39 = vmatpush1.msra.mxu0 %v32
    %40 = vmatprep.subr.mxu0 0.0
    %41 = vmatpush1.msra.mxu0 0.0
    %42 = vmatprep.subr.mxu0 0.0
    %43 = vmatpush1.msra.mxu0 0.0
    %44 = vmatprep.subr.mxu0 0.0
    %45 = vmatpush1.msra.mxu0 0.0
    %46 = vmatprep.subr.mxu0 0.0
    %47 = vmatpush1.msra.mxu0 0.0
    %48 = vmatprep.subr.mxu0 0.0
    %49 = vmatpush1.msra.mxu0 0.0
    %50 = vmatprep.subr.mxu0 0.0
    %51 = vmatpush1.msra.mxu0 0.0
    %52 = vmatprep.subr.mxu0 0.0
    %53 = vmatpush1.msra.mxu0 0.0
    %54 = vmatprep.subr.mxu0 0.0
    %55 = vmatpush1.msra.mxu0 0.0
    %56 = vmatprep.subr.mxu0 0.0
    %57 = vmatpush1.msra.mxu0 0.0
    %58 = vmatprep.subr.mxu0 0.0
    %59 = vmatpush1.msra.mxu0 0.0
    %60 = vmatprep.subr.mxu0 0.0
    %61 = vmatpush1.msra.mxu0 0.0
    %62 = vmatprep.subr.mxu0 0.0
    %63 = vmatpush1.msra.mxu0 0.0
    %64 = vmatprep.subr.mxu0 0.0
    %65 = vmatpush1.msra.mxu0 0.0
    %66 = vmatprep.subr.mxu0 0.0
    %67 = vmatpush1.msra.mxu0 0.0
    %68 = vmatprep.subr.mxu0 0.0
    %69 = vmatpush1.msra.mxu0 0.0
    %70 = vmatprep.subr.mxu0 0.0
    %71 = vmatpush1.msra.mxu0 0.0
    %72 = vmatprep.subr.mxu0 0.0
    %73 = vmatpush1.msra.mxu0 0.0
    %74 = vmatprep.subr.mxu0 0.0
    %75 = vmatpush1.msra.mxu0 0.0
    %76 = vmatprep.subr.mxu0 0.0
    %77 = vmatpush1.msra.mxu0 0.0
    %78 = vmatprep.subr.mxu0 0.0
    %79 = vmatpush1.msra.mxu0 0.0
    %80 = vmatprep.subr.mxu0 0.0
    %81 = vmatpush1.msra.mxu0 0.0
    %82 = vmatprep.subr.mxu0 0.0
    %83 = vmatpush1.msra.mxu0 0.0
    %84 = vmatprep.subr.mxu0 0.0
    %85 = vmatpush1.msra.mxu0 0.0
    %86 = vmatprep.subr.mxu0 0.0
    %87 = vmatpush1.msra.mxu0 0.0
    %88 = vmatprep.subr.mxu0 0.0
    %89 = vmatpush1.msra.mxu0 0.0
    %90 = vmatprep.subr.mxu0 0.0
    %91 = vmatpush1.msra.mxu0 0.0
    %92 = vmatprep.subr.mxu0 0.0
    %93 = vmatpush1.msra.mxu0 0.0
    %94 = vmatprep.subr.mxu0 0.0
    %95 = vmatpush1.msra.mxu0 0.0
    %96 = vmatprep.subr.mxu0 0.0
    %97 = vmatpush1.msra.mxu0 0.0
    %98 = vmatprep.subr.mxu0 0.0
    %99 = vmatpush1.msra.mxu0 0.0
    %100 = vmatprep.subr.mxu0 0.0
    %101 = vmatpush1.msra.mxu0 0.0
    %102 = vmatprep.mubr.f32.mxu0 0.0
    %103 = vmatmul.mubr.f32.gmra.mrb[0].mxu0 %v29
    %v104 = vpop.f32.mrb[0].mxu0
    %v105 = vadd.f32 %v22, %v104
    %v106 = vpop.f32.mrb[0].mxu0
    %v107 = vadd.f32 %v22, %v106
    %108 = vdwg.mxu0
    %109 = vmatprep.subr.mxu0 0.0
    %110 = vmatpush1.msra.mxu0 %v36
    %111 = vmatprep.subr.mxu0 0.0
    %112 = vmatpush1.msra.mxu0 0.0
    %113 = vmatprep.subr.mxu0 0.0
    %114 = vmatpush1.msra.mxu0 0.0
    %115 = vmatprep.subr.mxu0 0.0
    %116 = vmatpush1.msra.mxu0 0.0
    %117 = vmatprep.subr.mxu0 0.0
    %118 = vmatpush1.msra.mxu0 0.0
    %119 = vmatprep.subr.mxu0 0.0
    %120 = vmatpush1.msra.mxu0 0.0
    %121 = vmatprep.subr.mxu0 0.0
    %122 = vmatpush1.msra.mxu0 0.0
    %123 = vmatprep.subr.mxu0 0.0
    %124 = vmatpush1.msra.mxu0 0.0
    %125 = vmatprep.subr.mxu0 0.0
    %126 = vmatpush1.msra.mxu0 0.0
    %127 = vmatprep.subr.mxu0 0.0
    %128 = vmatpush1.msra.mxu0 0.0
    %129 = vmatprep.subr.mxu0 0.0
    %130 = vmatpush1.msra.mxu0 0.0
    %131 = vmatprep.subr.mxu0 0.0
    %132 = vmatpush1.msra.mxu0 0.0
    %133 = vmatprep.subr.mxu0 0.0
    %134 = vmatpush1.msra.mxu0 0.0
    %135 = vmatprep.subr.mxu0 0.0
    %136 = vmatpush1.msra.mxu0 0.0
    %137 = vmatprep.subr.mxu0 0.0
    %138 = vmatpush1.msra.mxu0 0.0
    %139 = vmatprep.subr.mxu0 0.0
    %140 = vmatpush1.msra.mxu0 0.0
    %141 = vmatprep.subr.mxu0 0.0
    %142 = vmatpush1.msra.mxu0 0.0
    %143 = vmatprep.subr.mxu0 0.0
    %144 = vmatpush1.msra.mxu0 0.0
    %145 = vmatprep.subr.mxu0 0.0
    %146 = vmatpush1.msra.mxu0 0.0
    %147 = vmatprep.subr.mxu0 0.0
    %148 = vmatpush1.msra.mxu0 0.0
    %149 = vmatprep.subr.mxu0 0.0
    %150 = vmatpush1.msra.mxu0 0.0
    %151 = vmatprep.subr.mxu0 0.0
    %152 = vmatpush1.msra.mxu0 0.0
    %153 = vmatprep.subr.mxu0 0.0
    %154 = vmatpush1.msra.mxu0 0.0
    %155 = vmatprep.subr.mxu0 0.0
    %156 = vmatpush1.msra.mxu0 0.0
    %157 = vmatprep.subr.mxu0 0.0
    %158 = vmatpush1.msra.mxu0 0.0
    %159 = vmatprep.subr.mxu0 0.0
    %160 = vmatpush1.msra.mxu0 0.0
    %161 = vmatprep.subr.mxu0 0.0
    %162 = vmatpush1.msra.mxu0 0.0
    %163 = vmatprep.subr.mxu0 0.0
    %164 = vmatpush1.msra.mxu0 0.0
    %165 = vmatprep.subr.mxu0 0.0
    %166 = vmatpush1.msra.mxu0 0.0
    %167 = vmatprep.subr.mxu0 0.0
    %168 = vmatpush1.msra.mxu0 0.0
    %169 = vmatprep.subr.mxu0 0.0
    %170 = vmatpush1.msra.mxu0 0.0
    %171 = vmatprep.subr.mxu0 0.0
    %172 = vmatpush1.msra.mxu0 0.0
    %173 = vmatprep.mubr.f32.mxu0 0.0
    %174 = vmatmul.mubr.f32.gmra.mrb[0].mxu0 %v29
    %v175 = vpop.f32.mrb[0].mxu0
    %v176 = vadd.f32 %v22, %v175
    %v177 = vpop.f32.mrb[0].mxu0
    %178 = vdwg.mxu0
    %vm179 = vcmp.gt.f32.partialorder %v105, 0.0
    %vm180 = vcmp.gt.f32.partialorder %v107, 0.0
    %vm181 = vcmp.gt.f32.partialorder %v176, 0.0
    %v182 = vmul.f32 %v105, 0.01
    %v183 = vmul.f32 %v107, 0.01
    %v184 = vmul.f32 %v176, 0.01
    %v185 = vsel %vm179, %v105, %v182
    %v186 = vsel %vm180, %v107, %v183
    %v187 = vsel %vm181, %v176, %v184
    %188 = vst [vmem:[#allocation2] sm:$0xff] %v185
    %189 = vst [vmem:[#allocation2 + $0x8] sm:$0xff] %v186
    %vm190 = vcmask 556032
    %191 = vst.msk [vmem:[#allocation2 + $0x10] sm:$0xff] %vm190, %v187
    %s192 = scalar_lea.vmem %s0, 12
    %v193 = vld [vmem:[%s192] sm:$0x77]
    %v194 = vld [vmem:[%s192 + $0x8] sm:$0x7]
    %v197 = vcombine.high %v193, %v193
    %v198 = vsel %vm31, %v193, 0
    %v200 = vsel %vm31, %v197, 0
    %v202 = vsel %vm31, %v194, 0
    %204 = vmatprep.subr.mxu0 %v200
    %205 = vmatpush1.msra.mxu0 %v198
    %206 = vmatprep.subr.mxu0 0.0
    %207 = vmatpush1.msra.mxu0 0.0
    %208 = vmatprep.subr.mxu0 0.0
    %209 = vmatpush1.msra.mxu0 0.0
    %210 = vmatprep.subr.mxu0 0.0
    %211 = vmatpush1.msra.mxu0 0.0
    %212 = vmatprep.subr.mxu0 0.0
    %213 = vmatpush1.msra.mxu0 0.0
    %214 = vmatprep.subr.mxu0 0.0
    %215 = vmatpush1.msra.mxu0 0.0
    %216 = vmatprep.subr.mxu0 0.0
    %217 = vmatpush1.msra.mxu0 0.0
    %218 = vmatprep.subr.mxu0 0.0
    %219 = vmatpush1.msra.mxu0 0.0
    %220 = vmatprep.subr.mxu0 0.0
    %221 = vmatpush1.msra.mxu0 0.0
    %222 = vmatprep.subr.mxu0 0.0
    %223 = vmatpush1.msra.mxu0 0.0
    %224 = vmatprep.subr.mxu0 0.0
    %225 = vmatpush1.msra.mxu0 0.0
    %226 = vmatprep.subr.mxu0 0.0
    %227 = vmatpush1.msra.mxu0 0.0
    %228 = vmatprep.subr.mxu0 0.0
    %229 = vmatpush1.msra.mxu0 0.0
    %230 = vmatprep.subr.mxu0 0.0
    %231 = vmatpush1.msra.mxu0 0.0
    %232 = vmatprep.subr.mxu0 0.0
    %233 = vmatpush1.msra.mxu0 0.0
    %234 = vmatprep.subr.mxu0 0.0
    %235 = vmatpush1.msra.mxu0 0.0
    %236 = vmatprep.subr.mxu0 0.0
    %237 = vmatpush1.msra.mxu0 0.0
    %238 = vmatprep.subr.mxu0 0.0
    %239 = vmatpush1.msra.mxu0 0.0
    %240 = vmatprep.subr.mxu0 0.0
    %241 = vmatpush1.msra.mxu0 0.0
    %242 = vmatprep.subr.mxu0 0.0
    %243 = vmatpush1.msra.mxu0 0.0
    %244 = vmatprep.subr.mxu0 0.0
    %245 = vmatpush1.msra.mxu0 0.0
    %246 = vmatprep.subr.mxu0 0.0
    %247 = vmatpush1.msra.mxu0 0.0
    %248 = vmatprep.subr.mxu0 0.0
    %249 = vmatpush1.msra.mxu0 0.0
    %250 = vmatprep.subr.mxu0 0.0
    %251 = vmatpush1.msra.mxu0 0.0
    %252 = vmatprep.subr.mxu0 0.0
    %253 = vmatpush1.msra.mxu0 0.0
    %254 = vmatprep.subr.mxu0 0.0
    %255 = vmatpush1.msra.mxu0 0.0
    %256 = vmatprep.subr.mxu0 0.0
    %257 = vmatpush1.msra.mxu0 0.0
    %258 = vmatprep.subr.mxu0 0.0
    %259 = vmatpush1.msra.mxu0 0.0
    %260 = vmatprep.subr.mxu0 0.0
    %261 = vmatpush1.msra.mxu0 0.0
    %262 = vmatprep.subr.mxu0 0.0
    %263 = vmatpush1.msra.mxu0 0.0
    %264 = vmatprep.subr.mxu0 0.0
    %265 = vmatpush1.msra.mxu0 0.0
    %266 = vmatprep.subr.mxu0 0.0
    %267 = vmatpush1.msra.mxu0 0.0
    %268 = vmatprep.mubr.f32.mxu0 0.0
    %269 = vmatmul.mubr.f32.gmra.mrb[0].mxu0 %v29
    %v270 = vpop.f32.mrb[0].mxu0
    %v271 = vadd.f32 %v22, %v270
    %v272 = vpop.f32.mrb[0].mxu0
    %v273 = vadd.f32 %v22, %v272
    %274 = vdwg.mxu0
    %275 = vmatprep.subr.mxu0 0.0
    %276 = vmatpush1.msra.mxu0 %v202
    %277 = vmatprep.subr.mxu0 0.0
    %278 = vmatpush1.msra.mxu0 0.0
    %279 = vmatprep.subr.mxu0 0.0
    %280 = vmatpush1.msra.mxu0 0.0
    %281 = vmatprep.subr.mxu0 0.0
    %282 = vmatpush1.msra.mxu0 0.0
    %283 = vmatprep.subr.mxu0 0.0
    %284 = vmatpush1.msra.mxu0 0.0
    %285 = vmatprep.subr.mxu0 0.0
    %286 = vmatpush1.msra.mxu0 0.0
    %287 = vmatprep.subr.mxu0 0.0
    %288 = vmatpush1.msra.mxu0 0.0
    %289 = vmatprep.subr.mxu0 0.0
    %290 = vmatpush1.msra.mxu0 0.0
    %291 = vmatprep.subr.mxu0 0.0
    %292 = vmatpush1.msra.mxu0 0.0
    %293 = vmatprep.subr.mxu0 0.0
    %294 = vmatpush1.msra.mxu0 0.0
    %295 = vmatprep.subr.mxu0 0.0
    %296 = vmatpush1.msra.mxu0 0.0
    %297 = vmatprep.subr.mxu0 0.0
    %298 = vmatpush1.msra.mxu0 0.0
    %299 = vmatprep.subr.mxu0 0.0
    %300 = vmatpush1.msra.mxu0 0.0
    %301 = vmatprep.subr.mxu0 0.0
    %302 = vmatpush1.msra.mxu0 0.0
    %303 = vmatprep.subr.mxu0 0.0
    %304 = vmatpush1.msra.mxu0 0.0
    %305 = vmatprep.subr.mxu0 0.0
    %306 = vmatpush1.msra.mxu0 0.0
    %307 = vmatprep.subr.mxu0 0.0
    %308 = vmatpush1.msra.mxu0 0.0
    %309 = vmatprep.subr.mxu0 0.0
    %310 = vmatpush1.msra.mxu0 0.0
    %311 = vmatprep.subr.mxu0 0.0
    %312 = vmatpush1.msra.mxu0 0.0
    %313 = vmatprep.subr.mxu0 0.0
    %314 = vmatpush1.msra.mxu0 0.0
    %315 = vmatprep.subr.mxu0 0.0
    %316 = vmatpush1.msra.mxu0 0.0
    %317 = vmatprep.subr.mxu0 0.0
    %318 = vmatpush1.msra.mxu0 0.0
    %319 = vmatprep.subr.mxu0 0.0
    %320 = vmatpush1.msra.mxu0 0.0
    %321 = vmatprep.subr.mxu0 0.0
    %322 = vmatpush1.msra.mxu0 0.0
    %323 = vmatprep.subr.mxu0 0.0
    %324 = vmatpush1.msra.mxu0 0.0
    %325 = vmatprep.subr.mxu0 0.0
    %326 = vmatpush1.msra.mxu0 0.0
    %327 = vmatprep.subr.mxu0 0.0
    %328 = vmatpush1.msra.mxu0 0.0
    %329 = vmatprep.subr.mxu0 0.0
    %330 = vmatpush1.msra.mxu0 0.0
    %331 = vmatprep.subr.mxu0 0.0
    %332 = vmatpush1.msra.mxu0 0.0
    %333 = vmatprep.subr.mxu0 0.0
    %334 = vmatpush1.msra.mxu0 0.0
    %335 = vmatprep.subr.mxu0 0.0
    %336 = vmatpush1.msra.mxu0 0.0
    %337 = vmatprep.subr.mxu0 0.0
    %338 = vmatpush1.msra.mxu0 0.0
    %339 = vmatprep.mubr.f32.mxu0 0.0
    %340 = vmatmul.mubr.f32.gmra.mrb[0].mxu0 %v29
    %v341 = vpop.f32.mrb[0].mxu0
    %v342 = vadd.f32 %v22, %v341
    %v343 = vpop.f32.mrb[0].mxu0
    %344 = vdwg.mxu0
    %vm345 = vcmp.gt.f32.partialorder %v271, 0.0
    %vm346 = vcmp.gt.f32.partialorder %v273, 0.0
    %vm347 = vcmp.gt.f32.partialorder %v342, 0.0
    %v348 = vmul.f32 %v271, 0.01
    %v349 = vmul.f32 %v273, 0.01
    %v350 = vmul.f32 %v342, 0.01
    %v351 = vsel %vm345, %v271, %v348
    %v352 = vsel %vm346, %v273, %v349
    %v353 = vsel %vm347, %v342, %v350
    %s354 = scalar_lea.vmem [#allocation2], 24
    %355 = vst [vmem:[%s354] sm:$0xff] %v351
    %356 = vst [vmem:[%s354 + $0x8] sm:$0xff] %v352
    %357 = vst.msk [vmem:[%s354 + $0x10] sm:$0xff] %vm190, %v353
    // Predicated region
    $region14: #{tpu_custom_call.1} parent=1 // pred_check
      _
    $region15: #{tpu_custom_call.1} parent=1 // pred_check_branch
      %359 = sbr.rel (0) target = $region17
    $region16: #{tpu_custom_call.1} parent=1 // pred_region
      %s361 = ssub.s32 768, 768
      %362 = vsyncadd [#allocation3], %s361
      %s363 = sshll.u32 [#allocation2], 4
      %s364 = int_to_ptr.vmem [resolvable:$true] %s363
      %369 = dma.vmem_to_hbm [thread:$0]  %s364, 768, %s3, [#allocation3], 384, 384, 24
    $region17: #{tpu_custom_call.1} parent=1 // pred_fallthru
      _
    // Predicated region
    $region18: #{tpu_custom_call.1} parent=1 // pred_check
      _
    $region19: #{tpu_custom_call.1} parent=1 // pred_check_branch
      %371 = sbr.rel (0) target = $region21
    $region20: #{tpu_custom_call.1} parent=1 // pred_region
      %372 = dma.done [#allocation3], 768
    $region21: #{tpu_custom_call.1} parent=1 // pred_fallthru
      _
    %373 = vsyncpa [#allocation3], 1

</llo_original>
